<compile_context>
chip_gen: v5e
topology: v5e:2x2
jax: 0.10.0
libtpu: 0.0.40
codegen_flags: <defaults>
</compile_context>

<pallas_src>
import jax
import jax.numpy as jnp
from jax import lax
from jax.experimental import pallas as pl
from jax.experimental.pallas import tpu as pltpu


# ---------------------------------------------------------------------------
# Kernels
# ---------------------------------------------------------------------------
def _make_kernel_pixel_tiled(c):
    """Block = (C, TILE_PX) for one batch element (large-image path)."""
    use_vpu_fma = c <= 8

    def kernel(w_ref, x_ref, o_ref):
        w = w_ref[...]                                 # (C, C) f32, resident
        x = x_ref[...].astype(jnp.float32)             # (C, T)
        if use_vpu_fma:
            # z[co, :] = sum_ci W[co, ci] * x[ci, :] — unrolled broadcast FMAs.
            acc = w[:, 0:1] * x[0:1, :]
            for ci in range(1, c):
                acc = acc + w[:, ci:ci + 1] * x[ci:ci + 1, :]
        else:
            acc = jnp.dot(w, x, preferred_element_type=jnp.float32)
        o_ref[...] = acc.astype(o_ref.dtype)

    return kernel


def _make_kernel_batch_grouped(c, g):
    """Block = (G, C, HW): G whole images per grid step (small-image path)."""
    use_vpu_fma = c <= 8

    def kernel(w_ref, x_ref, o_ref):
        w = w_ref[...]                                 # (C, C) f32, resident
        if use_vpu_fma:
            x = x_ref[...].astype(jnp.float32)         # (G, C, HW)
            acc = w[None, :, 0:1] * x[:, 0:1, :]
            for ci in range(1, c):
                acc = acc + w[None, :, ci:ci + 1] * x[:, ci:ci + 1, :]
            o_ref[...] = acc.astype(o_ref.dtype)
        else:
            def body(gi, carry):
                xg = x_ref[gi].astype(jnp.float32)     # (C, HW)
                o_ref[gi] = jnp.dot(
                    w, xg, preferred_element_type=jnp.float32).astype(o_ref.dtype)
                return carry
            lax.fori_loop(0, g, body, 0, unroll=g <= 4)

    return kernel


# ---------------------------------------------------------------------------
# Host-side helpers
# ---------------------------------------------------------------------------
def _round_up(x, m):
    return ((x + m - 1) // m) * m


def _vmem_budget_bytes():
    """Generation-aware VMEM budget for double-buffered in+out blocks."""
    vmem = 0
    try:
        info = pltpu.get_tpu_info()
        for attr in ("vmem_capacity_bytes", "vmem_bytes", "vmem_size_bytes"):
            v = getattr(info, attr, None)
            if v:
                vmem = int(v)
                break
    except Exception:
        vmem = 0
    if vmem >= (96 << 20):
        return 56 << 20   # v5e / v6e: 128 MiB physical VMEM per TensorCore
    if vmem > 0:
        return 36 << 20   # v7x: 64 MiB physical per TC (32 MiB scoped default)
    return 32 << 20       # unknown chip: conservative default


def conv1x1_pallas(x_nchw, weight, *, max_block_bytes=None):
    """z[b, co, h, w] = sum_ci weight[co, ci] * x[b, ci, h, w]  (1x1 conv, no bias)."""
    b, c, h, w = x_nchw.shape
    hw = h * w
    itemsize = jnp.dtype(x_nchw.dtype).itemsize
    weight = weight.astype(jnp.float32)

    x = x_nchw.reshape(b, c, hw)           # metadata-only reshape, no HBM pass

    budget = _vmem_budget_bytes()
    # in + out, double-buffered = 4 live blocks; keep ~20% headroom.
    block_bytes_max = max(budget // 5, 1 << 20)
    if max_block_bytes is not None:        # test / tuning hook
        block_bytes_max = int(max_block_bytes)
    img_bytes = c * hw * itemsize

    if img_bytes <= block_bytes_max:
        # ---- Small image: group G whole (contiguous) images per grid step. ----
        g = max(1, min(b, block_bytes_max // max(img_bytes, 1)))
        steps = pl.cdiv(b, g)
        if steps == 1 and b >= 2:
            g = pl.cdiv(b, 2)              # >= 2 steps so v7x uses both TensorCores
        elif steps > 1 and steps % 2 == 1 and b % 2 == 0:
            g = pl.cdiv(b, steps + 1)      # prefer an even, balanced step count
        steps = pl.cdiv(b, g)
        grid = (steps,)
        in_specs = [
            pl.BlockSpec((c, c), lambda i: (0, 0)),          # weight, resident
            pl.BlockSpec((g, c, hw), lambda i: (i, 0, 0)),
        ]
        out_spec = pl.BlockSpec((g, c, hw), lambda i: (i, 0, 0))
        kernel = _make_kernel_batch_grouped(c, g)
        block_bytes = g * img_bytes
        dim_sem = ("parallel",)
    else:
        # ---- Large image: tile the pixel (lane) axis per batch element. ----
        tile_px = max(128, (block_bytes_max // (c * itemsize)) // 128 * 128)
        px_steps = pl.cdiv(hw, tile_px)
        if b % 2 == 1 and px_steps % 2 == 1 and px_steps > 1:
            # balance work across v7x's two TensorCores when b alone can't
            tile_px = max(128, _round_up(pl.cdiv(hw, px_steps + 1), 128))
            px_steps = pl.cdiv(hw, tile_px)
        grid = (b, px_steps)
        in_specs = [
            pl.BlockSpec((c, c), lambda bi, j: (0, 0)),
            pl.BlockSpec((pl.Squeezed(), c, tile_px), lambda bi, j: (bi, 0, j)),
        ]
        out_spec = pl.BlockSpec((pl.Squeezed(), c, tile_px), lambda bi, j: (bi, 0, j))
        kernel = _make_kernel_pixel_tiled(c)
        block_bytes = c * tile_px * itemsize
        dim_sem = ("parallel", "parallel")

    vmem_limit = int(min(max(4 * block_bytes + (2 << 20), 8 << 20), budget))

    cost = pl.CostEstimate(
        flops=2 * b * hw * c * c,
        transcendentals=0,
        bytes_accessed=2 * b * c * hw * itemsize + c * c * 4,
    )

    out = pl.pallas_call(
        kernel,
        out_shape=jax.ShapeDtypeStruct((b, c, hw), x.dtype),
        grid_spec=pltpu.PrefetchScalarGridSpec(
            num_scalar_prefetch=0,
            grid=grid,
            in_specs=in_specs,
            out_specs=out_spec,
        ),
        compiler_params=pltpu.CompilerParams(
            dimension_semantics=dim_sem,
            vmem_limit_bytes=vmem_limit,
        ),
        cost_estimate=cost,
    )(weight, x)

    return out.reshape(b, c, h, w)


# ---------------------------------------------------------------------------
# Parameter construction (mirrors InvertibleConv1x1.__init__ with LU_decomposed=True).
# Small C x C linear algebra -> plain JAX glue.
# ---------------------------------------------------------------------------
def init_invconv_params(key, num_channels):
    w_init = jnp.linalg.qr(
        jax.random.normal(key, (num_channels, num_channels), dtype=jnp.float32)
    )[0]
    p, lower, upper = jax.scipy.linalg.lu(w_init)      # w_init = p @ lower @ upper
    s = jnp.diag(upper)
    sign_s = jnp.sign(s)
    log_s = jnp.log(jnp.abs(s))
    upper = jnp.triu(upper, 1)
    l_mask = jnp.tril(jnp.ones((num_channels, num_channels), jnp.float32), -1)
    eye = jnp.eye(num_channels, dtype=jnp.float32)
    return dict(p=p, sign_s=sign_s, lower=lower, log_s=log_s, upper=upper,
                l_mask=l_mask, eye=eye)


def get_weight(params, h, w, reverse):
    lower = params["lower"] * params["l_mask"] + params["eye"]
    u = params["upper"] * params["l_mask"].T
    u = u + jnp.diag(params["sign_s"] * jnp.exp(params["log_s"]))
    dlogdet = jnp.sum(params["log_s"]) * h * w
    if reverse:
        # weight = U^{-1} L^{-1} P^{-1}; P is a permutation so P^{-1} = P^T, and
        # triangular solves are more stable than explicit inverses.
        tmp = jax.scipy.linalg.solve_triangular(
            lower, params["p"].T, lower=True, unit_diagonal=True)
        weight = jax.scipy.linalg.solve_triangular(u, tmp, lower=False)
    else:
        weight = params["p"] @ (lower @ u)
    return weight, dlogdet


# ---------------------------------------------------------------------------
# Forward pass (matches InvertibleConv1x1.forward semantics)
# ---------------------------------------------------------------------------
def invertible_conv1x1_forward(params, x_nchw, logdet=None, reverse=False):
    _, _, h, w = x_nchw.shape
    weight, dlogdet = get_weight(params, h, w, reverse)
    z = conv1x1_pallas(x_nchw, weight)   # NCHW in, NCHW out — no host transposes
    if logdet is not None:
        logdet = logdet + dlogdet if not reverse else logdet - dlogdet
    return z, logdet


if __name__ == "__main__":
    key = jax.random.PRNGKey(0)
    k_param, k_x = jax.random.split(key)

    B, C, H, W = 2, 4, 16, 16
    params = init_invconv_params(k_param, C)
    x = jax.random.normal(k_x, (B, C, H, W), dtype=jnp.float32)
    logdet0 = jnp.zeros((B,), dtype=jnp.float32)

    z, logdet = invertible_conv1x1_forward(params, x, logdet=logdet0, reverse=False)
    jax.block_until_ready(z)
    jax.block_until_ready(logdet)

    # Reference check (plain JAX conv-as-matmul) to validate kernel semantics.
    weight_ref, dlogdet_ref = get_weight(params, H, W, reverse=False)
    z_ref = jnp.einsum("oc,bchw->bohw", weight_ref, x)
    assert z.shape == (B, C, H, W)
    assert jnp.allclose(z, z_ref, atol=1e-5, rtol=1e-5)
    assert jnp.allclose(logdet, logdet0 + dlogdet_ref, atol=1e-5)

    # Round-trip sanity: reverse conv inverts forward conv.
    x_rec, logdet_rt = invertible_conv1x1_forward(params, z, logdet=logdet, reverse=True)
    jax.block_until_ready(x_rec)
    assert jnp.allclose(x_rec, x, atol=1e-4, rtol=1e-4)
    assert jnp.allclose(logdet_rt, logdet0, atol=1e-3)

    # Ragged spatial (H*W not a multiple of 128): batch-grouped path, no host pad.
    x_odd = jax.random.normal(jax.random.PRNGKey(1), (1, C, 5, 7), dtype=jnp.float32)
    z_odd = conv1x1_pallas(x_odd, weight_ref)
    jax.block_until_ready(z_odd)
    assert jnp.allclose(z_odd, jnp.einsum("oc,bchw->bohw", weight_ref, x_odd),
                        atol=1e-5, rtol=1e-5)

    # Pixel-tiled path with a ragged last tile (force small blocks via the test hook).
    x_tiled = jax.random.normal(jax.random.PRNGKey(2), (1, C, 15, 20), dtype=jnp.float32)
    z_tiled = conv1x1_pallas(x_tiled, weight_ref, max_block_bytes=C * 128 * 4)
    jax.block_until_ready(z_tiled)
    assert jnp.allclose(z_tiled, jnp.einsum("oc,bchw->bohw", weight_ref, x_tiled),
                        atol=1e-5, rtol=1e-5)

    print("KERNEL_OK")
</pallas_src>

<mosaic_0001>
module attributes {stable_mosaic.version = 11 : i64} {
  func.func @kernel(%arg0: i32, %arg1: memref<4x4xf32, #tpu.memory_space<vmem>>, %arg2: memref<1x4x256xf32, #tpu.memory_space<vmem>>, %arg3: memref<1x4x256xf32, #tpu.memory_space<vmem>>) attributes {dimension_semantics = [#tpu.dimension_semantics<parallel>], iteration_bounds = array<i64: 2>, scalar_prefetch = 0 : i64, scratch_operands = 0 : i64, tpu.core_type = #tpu.core_type<tc>, window_params = [{pipeline_mode = #tpu.pipeline_mode<synchronous>, transform_indices = @transform_0, window_bounds = array<i64: 4, 4>}, {transform_indices = @transform_1, window_bounds = array<i64: 1, 4, 256>}, {transform_indices = @transform_2, window_bounds = array<i64: 1, 4, 256>}]} {
    %c0 = arith.constant 0 : index
    %c0_0 = arith.constant 0 : index
    %0 = vector.load %arg1[%c0, %c0_0] : memref<4x4xf32, #tpu.memory_space<vmem>>, vector<4x4xf32>
    %c0_1 = arith.constant 0 : index
    %c0_2 = arith.constant 0 : index
    %c0_3 = arith.constant 0 : index
    %1 = vector.load %arg2[%c0_1, %c0_2, %c0_3] : memref<1x4x256xf32, #tpu.memory_space<vmem>>, vector<1x4x256xf32>
    %2 = vector.extract_strided_slice %0 {offsets = [0, 0], sizes = [4, 1], strides = [1, 1]} : vector<4x4xf32> to vector<4x1xf32>
    %3 = vector.shape_cast %2 : vector<4x1xf32> to vector<1x4x1xf32>
    %4 = vector.extract_strided_slice %1 {offsets = [0, 0, 0], sizes = [1, 1, 256], strides = [1, 1, 1]} : vector<1x4x256xf32> to vector<1x1x256xf32>
    %5 = vector.broadcast %3 : vector<1x4x1xf32> to vector<1x4x256xf32>
    %6 = vector.broadcast %4 : vector<1x1x256xf32> to vector<1x4x256xf32>
    %7 = arith.mulf %5, %6 : vector<1x4x256xf32>
    %8 = vector.extract_strided_slice %0 {offsets = [0, 1], sizes = [4, 1], strides = [1, 1]} : vector<4x4xf32> to vector<4x1xf32>
    %9 = vector.shape_cast %8 : vector<4x1xf32> to vector<1x4x1xf32>
    %10 = vector.extract_strided_slice %1 {offsets = [0, 1, 0], sizes = [1, 1, 256], strides = [1, 1, 1]} : vector<1x4x256xf32> to vector<1x1x256xf32>
    %11 = vector.broadcast %9 : vector<1x4x1xf32> to vector<1x4x256xf32>
    %12 = vector.broadcast %10 : vector<1x1x256xf32> to vector<1x4x256xf32>
    %13 = arith.mulf %11, %12 : vector<1x4x256xf32>
    %14 = arith.addf %7, %13 : vector<1x4x256xf32>
    %15 = vector.extract_strided_slice %0 {offsets = [0, 2], sizes = [4, 1], strides = [1, 1]} : vector<4x4xf32> to vector<4x1xf32>
    %16 = vector.shape_cast %15 : vector<4x1xf32> to vector<1x4x1xf32>
    %17 = vector.extract_strided_slice %1 {offsets = [0, 2, 0], sizes = [1, 1, 256], strides = [1, 1, 1]} : vector<1x4x256xf32> to vector<1x1x256xf32>
    %18 = vector.broadcast %16 : vector<1x4x1xf32> to vector<1x4x256xf32>
    %19 = vector.broadcast %17 : vector<1x1x256xf32> to vector<1x4x256xf32>
    %20 = arith.mulf %18, %19 : vector<1x4x256xf32>
    %21 = arith.addf %14, %20 : vector<1x4x256xf32>
    %22 = vector.extract_strided_slice %0 {offsets = [0, 3], sizes = [4, 1], strides = [1, 1]} : vector<4x4xf32> to vector<4x1xf32>
    %23 = vector.shape_cast %22 : vector<4x1xf32> to vector<1x4x1xf32>
    %24 = vector.extract_strided_slice %1 {offsets = [0, 3, 0], sizes = [1, 1, 256], strides = [1, 1, 1]} : vector<1x4x256xf32> to vector<1x1x256xf32>
    %25 = vector.broadcast %23 : vector<1x4x1xf32> to vector<1x4x256xf32>
    %26 = vector.broadcast %24 : vector<1x1x256xf32> to vector<1x4x256xf32>
    %27 = arith.mulf %25, %26 : vector<1x4x256xf32>
    %28 = arith.addf %21, %27 : vector<1x4x256xf32>
    %c0_4 = arith.constant 0 : index
    %c0_5 = arith.constant 0 : index
    %c0_6 = arith.constant 0 : index
    %29 = vector.load %arg3[%c0_4, %c0_5, %c0_6] : memref<1x4x256xf32, #tpu.memory_space<vmem>>, vector<1x4x256xf32>
    tpu.vector_store %arg3[%c0_4, %c0_5, %c0_6], %28 {strides = array<i32>} : memref<1x4x256xf32, #tpu.memory_space<vmem>>, vector<1x4x256xf32>,
    return
  }
  func.func @transform_0(%arg0: i32) -> (i32, i32) {
    %c0_i32 = arith.constant 0 : i32
    %c0_i32_0 = arith.constant 0 : i32
    %c0_i32_1 = arith.constant 0 : i32
    return %c0_i32, %c0_i32_0 : i32, i32
  }
  func.func @transform_1(%arg0: i32) -> (i32, i32, i32) {
    %c0_i32 = arith.constant 0 : i32
    %c0_i32_0 = arith.constant 0 : i32
    %c0_i32_1 = arith.constant 0 : i32
    return %arg0, %c0_i32, %c0_i32_0 : i32, i32, i32
  }
  func.func @transform_2(%arg0: i32) -> (i32, i32, i32) {
    %c0_i32 = arith.constant 0 : i32
    %c0_i32_0 = arith.constant 0 : i32
    %c0_i32_1 = arith.constant 0 : i32
    return %arg0, %c0_i32, %c0_i32_0 : i32, i32, i32
  }
}

</mosaic_0001>

<llo_original>
// kernel: tpu_custom_call.1
$region0: #{tpu_custom_call.1}
  #allocation0 [shape = 'u32[]', space=smem, size = 0x4, offset = 0x4, fixed_abs, tag = 'smem constant byte address 0x4 - core index']
  #allocation1 [shape = 'u32[72,128]{1,0:T(1,128)}', space=vmem, size = 0x9000, scoped, tag = 'internal scratch']
  %s0 = inlined_call_operand.hbm [shape: f32[4,4], index: 0, kind: input, shape index: {}]
  %s1 = inlined_call_operand.hbm [shape: f32[2,4,256], index: 1, kind: input, shape index: {}]
  %s2 = inlined_call_operand.hbm [shape: f32[2,4,256], index: 2, kind: output, shape index: {}]
  %s3 = sld [smem:[#allocation0]]
  $region49: #{tpu_custom_call.1} parent=0
    _
  %s5 = ssub.s32 1, %s3
  %s6 = scalar_select 0, %s5, %s3
  $region1: #{tpu_custom_call.1} parent=0
    #allocation2 [shape = 'u8[2048]{0}', space=vmem, size = 0x800, scoped, tag = 'input window, operand 0, single buffered']
    #allocation3 [shape = 's32[2]{0}', space=sflag, size = 0x8, scoped, tag = 'scoped memory for tpu_custom_call.1']
    #allocation4 [shape = 's32[2]{0}', space=sflag, size = 0x8, scoped, tag = 'scoped memory for tpu_custom_call.1']
    #allocation5 [shape = 'u8[8192]{0}', space=vmem, size = 0x2000, scoped, tag = 'input window, operand 1']
    #allocation6 [shape = 's32[2]{0}', space=sflag, size = 0x8, scoped, tag = 'scoped memory for tpu_custom_call.1']
    #allocation7 [shape = 'u8[8192]{0}', space=vmem, size = 0x2000, scoped, tag = 'output window, operand 0']
    %7 = vsyncpa [#allocation3], 0
    %8 = vsyncpa [#allocation6], 0
    %s9 = scalar_lea.sflag [#allocation6], 1
    %10 = vsyncpa %s9, 0
    %11 = vsyncpa [#allocation4], 0
    %s12 = scalar_lea.sflag [#allocation4], 1
    %13 = vsyncpa %s12, 0
    loop: start=0, step=1, limit=4
    $region2: #{tpu_custom_call.1} parent=1 // loop_pre_header
      _
    $region3: #{tpu_custom_call.1} parent=1 // loop_header
      %s15 = sphi 0, %s19
      %p16 = scmp.ge.s32.totalorder %s15, 4
      %s23 = sphi 0, %s23
      %s25 = sphi 0, %s23
      %s26 = sphi 0, %s25
      %s40 = sphi 0, %s26
      %s46 = sphi 0, %s48
      %s49 = sphi 0, %s46
      %s50 = sphi 0, %s49
      %s66 = sphi 0, %s50
      %s72 = sphi 0, %s74
      %s75 = sphi 0, %s72
      %s76 = sphi 0, %s75
      %s92 = sphi 0, %s76
    $region4: #{tpu_custom_call.1} parent=1 // loop_header_branch
      %18 = sbr.rel (%p16) target = $region8
    $region5: #{tpu_custom_call.1} parent=1 // loop_body
      %s20 = ssub.s32 %s15, 1
      %s21 = ssub.s32 %s15, 2
      %s22 = sadd.s32 %s15, 1
      %s24 = sadd.s32 %s23, 1
      %p27 = scmp.eq.s32.totalorder %s15, 1
      %p28 = scmp.ne.s32.totalorder %s23, %s25
      %p29 = scmp.eq.s32.totalorder %s15, 0
      %p30 = por %p28, %p29
      %p31 = scmp.ne.s32.totalorder %s23, %s25
      %p32 = scmp.eq.s32.totalorder %s20, 1
      %p33 = por %p31, %p32
      %p34 = scmp.ne.s32.totalorder %s25, %s26
      %p35 = scmp.eq.s32.totalorder %s20, 0
      %p36 = por %p34, %p35
      %p37 = scmp.ne.s32.totalorder %s25, %s26
      %p38 = scmp.eq.s32.totalorder %s21, 1
      %p39 = por %p37, %p38
      %p41 = scmp.ne.s32.totalorder %s26, %s40
      %p42 = scmp.eq.s32.totalorder %s21, 0
      %p43 = por %p41, %p42
      %s44 = ssub.s32 %s15, %s22
      %p45 = scmp.eq.s32.totalorder %s44, 0
      %s47 = sadd.s32 %s46, 1
      %s48 = scalar_select %p45, %s46, %s47
      %p51 = pneg %p45
      %p52 = scmp.eq.s32.totalorder %s15, 1
      %p53 = por %p51, %p52
      %p54 = scmp.ne.s32.totalorder %s46, %s49
      %p55 = scmp.eq.s32.totalorder %s15, 0
      %p56 = por %p54, %p55
      %p57 = scmp.ne.s32.totalorder %s46, %s49
      %p58 = scmp.eq.s32.totalorder %s20, 1
      %p59 = por %p57, %p58
      %p60 = scmp.ne.s32.totalorder %s49, %s50
      %p61 = scmp.eq.s32.totalorder %s20, 0
      %p62 = por %p60, %p61
      %p63 = scmp.ne.s32.totalorder %s49, %s50
      %p64 = scmp.eq.s32.totalorder %s21, 1
      %p65 = por %p63, %p64
      %p67 = scmp.ne.s32.totalorder %s50, %s66
      %p68 = scmp.eq.s32.totalorder %s21, 0
      %p69 = por %p67, %p68
      %s70 = ssub.s32 %s15, %s22
      %p71 = scmp.eq.s32.totalorder %s70, 0
      %s73 = sadd.s32 %s72, 1
      %s74 = scalar_select %p71, %s72, %s73
      %p77 = pneg %p71
      %p78 = scmp.eq.s32.totalorder %s15, 1
      %p79 = por %p77, %p78
      %p80 = scmp.ne.s32.totalorder %s72, %s75
      %p81 = scmp.eq.s32.totalorder %s15, 0
      %p82 = por %p80, %p81
      %p83 = scmp.ne.s32.totalorder %s72, %s75
      %p84 = scmp.eq.s32.totalorder %s20, 1
      %p85 = por %p83, %p84
      %p86 = scmp.ne.s32.totalorder %s75, %s76
      %p87 = scmp.eq.s32.totalorder %s20, 0
      %p88 = por %p86, %p87
      %p89 = scmp.ne.s32.totalorder %s75, %s76
      %p90 = scmp.eq.s32.totalorder %s21, 1
      %p91 = por %p89, %p90
      %p93 = scmp.ne.s32.totalorder %s76, %s92
      %p94 = scmp.eq.s32.totalorder %s21, 0
      %p95 = por %p93, %p94
      %p96 = scmp.le.s32.totalorder 1, %s15
      %p97 = scmp.lt.s32.totalorder %s15, 3
      %p98 = pnand %p96, %p97
      %p99 = pneg %p98
      // Predicated region
      $region9: #{tpu_custom_call.1} parent=5 // pred_check
        _
      $region10: #{tpu_custom_call.1} parent=5 // pred_check_branch
        %101 = sbr.rel (%p98) target = $region12
      $region11: #{tpu_custom_call.1} parent=5 // pred_region
        %s102 = ssub.s32 %s15, 1
        // Predicated region
        $region13: #{tpu_custom_call.1} parent=11 // pred_check
          %p103 = pneg %p36
        $region14: #{tpu_custom_call.1} parent=11 // pred_check_branch
          %105 = sbr.rel (%p103) target = $region16
        $region15: #{tpu_custom_call.1} parent=11 // pred_region
          %107 = vsyncadd [#allocation3], 0
          %s109 = sshll.u32 %s0, 4
          %s110 = int_to_ptr.hbm [resolvable:$true] %s109
          %s111 = sshll.u32 [#allocation2], 4
          %s112 = int_to_ptr.vmem [resolvable:$true] %s111
          %114 = dma.hbm_to_vmem [thread:$0]  %s110, 64, %s112, [#allocation3]
        $region16: #{tpu_custom_call.1} parent=11 // pred_fallthru
          _
      $region12: #{tpu_custom_call.1} parent=5 // pred_fallthru
        _
      %p115 = scmp.lt.s32.totalorder %s15, 2
      // Predicated region
      $region17: #{tpu_custom_call.1} parent=5 // pred_check
        %p116 = pneg %p115
      $region18: #{tpu_custom_call.1} parent=5 // pred_check_branch
        %118 = sbr.rel (%p116) target = $region20
      $region19: #{tpu_custom_call.1} parent=5 // pred_region
        // Predicated region
        $region21: #{tpu_custom_call.1} parent=19 // pred_check
          %p119 = pneg %p56
        $region22: #{tpu_custom_call.1} parent=19 // pred_check_branch
          %121 = sbr.rel (%p119) target = $region24
        $region23: #{tpu_custom_call.1} parent=19 // pred_region
          %s122 = sand.u32 %s46, 1
          %s123 = scalar_lea.sflag [#allocation6], %s122
          %s124 = sand.u32 %s46, 1
          %s125 = smul.addr %s124, 8
          %s126 = scalar_lea.vmem [#allocation5], %s125
          %128 = vsyncadd %s123, 0
          %s129 = smul.addr %s15, 2
          %s130 = smul.addr %s129, 4
          %s131 = scalar_lea.hbm %s1, %s130
          %s133 = sshll.u32 %s131, 4
          %s134 = int_to_ptr.hbm [resolvable:$true] %s133
          %s135 = sshll.u32 %s126, 4
          %s136 = int_to_ptr.vmem [resolvable:$true] %s135
          %138 = dma.hbm_to_vmem [thread:$0]  %s134, 128, %s136, %s123
        $region24: #{tpu_custom_call.1} parent=19 // pred_fallthru
          _
      $region20: #{tpu_custom_call.1} parent=5 // pred_fallthru
        _
      %p139 = scmp.le.s32.totalorder 1, %s15
      %p140 = scmp.lt.s32.totalorder %s15, 3
      %p141 = pnand %p139, %p140
      %p142 = pneg %p141
      // Predicated region
      $region25: #{tpu_custom_call.1} parent=5 // pred_check
        _
      $region26: #{tpu_custom_call.1} parent=5 // pred_check_branch
        %144 = sbr.rel (%p141) target = $region28
      $region27: #{tpu_custom_call.1} parent=5 // pred_region
        %s145 = ssub.s32 %s15, 1
        // Predicated region
        $region29: #{tpu_custom_call.1} parent=27 // pred_check
          %p146 = pneg %p36
        $region30: #{tpu_custom_call.1} parent=27 // pred_check_branch
          %148 = sbr.rel (%p146) target = $region32
        $region31: #{tpu_custom_call.1} parent=27 // pred_region
          %150 = dma.done [#allocation3], 64
        $region32: #{tpu_custom_call.1} parent=27 // pred_fallthru
          _
        %s151 = sand.u32 %s49, 1
        %s152 = scalar_lea.sflag [#allocation6], %s151
        %s153 = sand.u32 %s49, 1
        %s154 = smul.addr %s153, 8
        %s155 = scalar_lea.vmem [#allocation5], %s154
        // Predicated region
        $region33: #{tpu_custom_call.1} parent=27 // pred_check
          %p156 = pneg %p62
        $region34: #{tpu_custom_call.1} parent=27 // pred_check_branch
          %158 = sbr.rel (%p156) target = $region36
        $region35: #{tpu_custom_call.1} parent=27 // pred_region
          %160 = dma.done %s152, 128
        $region36: #{tpu_custom_call.1} parent=27 // pred_fallthru
          _
        %p161 = pneg %p36
        %p162 = pneg %p33
        %s163 = sand.u32 %s49, 1
        %s164 = scalar_lea.sflag [#allocation6], %s163
        %s165 = sand.u32 %s49, 1
        %s166 = smul.addr %s165, 8
        %s167 = scalar_lea.vmem [#allocation5], %s166
        %p168 = pneg %p62
        %p169 = pneg %p59
        %p170 = pneg %p88
        %p171 = pneg %p85
        %s172 = sand.u32 %s75, 1
        %s173 = scalar_lea.sflag [#allocation4], %s172
        %s174 = sand.u32 %s75, 1
        %s175 = smul.addr %s174, 8
        %s176 = scalar_lea.vmem [#allocation7], %s175
        %v177 = vld [vmem:[#allocation2] sm:$0xf]
        %v178 = vld [vmem:[%s155] sm:$0xff]
        %180 = vset.pattern.permute.xlu0 0
        %181 = vperm.xlu0 %180, %v177
        %v182 = vpop.permute.xlu0 %181
        %v185 = vperm.slane %v178, 0
        %v186 = vperm.slane %v178, 4
        %v189 = vperm.slane %v185, 0
        %v190 = vperm.slane %v186, 0
        %v191 = vmul.f32 %v182, %v189
        %v192 = vmul.f32 %v182, %v190
        %193 = vset.pattern.permute.xlu0 1
        %194 = vperm.xlu0 %193, %v177
        %v195 = vpop.permute.xlu0 %194
        %v197 = vperm.slane %v178, 1
        %v198 = vperm.slane %v178, 5
        %v201 = vperm.slane %v197, 1
        %v202 = vperm.slane %v198, 1
        %v203 = vmul.f32 %v195, %v201
        %v204 = vmul.f32 %v195, %v202
        %v205 = vadd.f32 %v191, %v203
        %v206 = vadd.f32 %v192, %v204
        %207 = vset.pattern.permute.xlu0 2
        %208 = vperm.xlu0 %207, %v177
        %v209 = vpop.permute.xlu0 %208
        %v211 = vperm.slane %v178, 2
        %v212 = vperm.slane %v178, 6
        %v215 = vperm.slane %v211, 2
        %v216 = vperm.slane %v212, 2
        %v217 = vmul.f32 %v209, %v215
        %v218 = vmul.f32 %v209, %v216
        %v219 = vadd.f32 %v205, %v217
        %v220 = vadd.f32 %v206, %v218
        %221 = vset.pattern.permute.xlu0 3
        %222 = vperm.xlu0 %221, %v177
        %v223 = vpop.permute.xlu0 %222
        %v225 = vperm.slane %v178, 3
        %v226 = vperm.slane %v178, 7
        %v229 = vperm.slane %v225, 3
        %v230 = vperm.slane %v226, 3
        %v231 = vmul.f32 %v223, %v229
        %v232 = vmul.f32 %v223, %v230
        %v233 = vadd.f32 %v219, %v231
        %v234 = vadd.f32 %v220, %v232
        %v237 = vrot.slane %v234, 4
        %vm238 = vcmask 1043456
        %v239 = vsel %vm238, %v233, %v237
        %241 = vst [vmem:[%s176] sm:$0xff] %v239
        %s242 = sand.u32 %s75, 1
        %s243 = scalar_lea.sflag [#allocation4], %s242
        %s244 = sand.u32 %s75, 1
        %s245 = smul.addr %s244, 8
        %s246 = scalar_lea.vmem [#allocation7], %s245
        // Predicated region
        $region37: #{tpu_custom_call.1} parent=27 // pred_check
          %p247 = pneg %p85
        $region38: #{tpu_custom_call.1} parent=27 // pred_check_branch
          %249 = sbr.rel (%p247) target = $region40
        $region39: #{tpu_custom_call.1} parent=27 // pred_region
          %251 = vsyncadd %s243, 0
          %s252 = smul.addr %s20, 2
          %s253 = smul.addr %s252, 4
          %s254 = scalar_lea.hbm %s2, %s253
          %s256 = sshll.u32 %s246, 4
          %s257 = int_to_ptr.vmem [resolvable:$true] %s256
          %s258 = sshll.u32 %s254, 4
          %s259 = int_to_ptr.hbm [resolvable:$true] %s258
          %261 = dma.vmem_to_hbm [thread:$0]  %s257, 128, %s259, %s243
        $region40: #{tpu_custom_call.1} parent=27 // pred_fallthru
          _
      $region28: #{tpu_custom_call.1} parent=5 // pred_fallthru
        _
      %p262 = scmp.le.s32.totalorder 2, %s15
      // Predicated region
      $region41: #{tpu_custom_call.1} parent=5 // pred_check
        %p263 = pneg %p262
      $region42: #{tpu_custom_call.1} parent=5 // pred_check_branch
        %265 = sbr.rel (%p263) target = $region44
      $region43: #{tpu_custom_call.1} parent=5 // pred_region
        %s266 = ssub.s32 %s15, 2
        // Predicated region
        $region45: #{tpu_custom_call.1} parent=43 // pred_check
          %p267 = pneg %p91
        $region46: #{tpu_custom_call.1} parent=43 // pred_check_branch
          %269 = sbr.rel (%p267) target = $region48
        $region47: #{tpu_custom_call.1} parent=43 // pred_region
          %s270 = sand.u32 %s76, 1
          %s271 = scalar_lea.sflag [#allocation4], %s270
          %s272 = sand.u32 %s76, 1
          %s273 = smul.addr %s272, 8
          %s274 = scalar_lea.vmem [#allocation7], %s273
          %276 = dma.done %s271, 128
        $region48: #{tpu_custom_call.1} parent=43 // pred_fallthru
          _
      $region44: #{tpu_custom_call.1} parent=5 // pred_fallthru
        _
    $region6: #{tpu_custom_call.1} parent=1 // loop_footer
      %s19 = sadd.s32 1, %s15
    $region7: #{tpu_custom_call.1} parent=1 // loop_footer_branch
      %14 = sbr.rel target = $region3
    $region8: #{tpu_custom_call.1} parent=1 // loop_exit
      _
    %277 = vsyncpa [#allocation3], 1
    %s278 = scalar_lea.sflag [#allocation3], 1
    %279 = vsyncpa %s278, 1
    %280 = vsyncpa [#allocation6], 1
    %s281 = scalar_lea.sflag [#allocation6], 1
    %282 = vsyncpa %s281, 1
    %283 = vsyncpa [#allocation4], 1
    %s284 = scalar_lea.sflag [#allocation4], 1
    %285 = vsyncpa %s284, 1

</llo_original>
